<compile_context>
chip_gen: v6e
topology: v6e:2x2x1
jax: 0.10.0
libtpu: 0.0.40
codegen_flags: <defaults>
</compile_context>

<pallas_src>
import functools
import math

import jax
import jax.numpy as jnp
from jax.experimental import pallas as pl
from jax.experimental.pallas import tpu as pltpu

_LANE = 128
_SUBLANE = 8


def _round_up(a: int, b: int) -> int:
    return ((a + b - 1) // b) * b


# --------------------------------- kernels ---------------------------------

def _lora_kernel_fused(alpha_ref, x_ref, a_ref, b_ref, o_ref):
    """Single K-step: y_tile = ((x_tile @ A) * alpha) @ B."""
    xa = jnp.dot(x_ref[...], a_ref[...], preferred_element_type=jnp.float32)
    xa = xa * alpha_ref[0]                     # scale tiny (tm, R) intermediate
    y = jnp.dot(xa, b_ref[...].astype(jnp.float32),
                preferred_element_type=jnp.float32)
    o_ref[...] = y.astype(o_ref.dtype)


def _lora_kernel_ktiled(alpha_ref, x_ref, a_ref, b_ref, o_ref, acc_ref, *,
                        tk: int, k_rem: int):
    """K-tiled reduction: accumulate x_tile @ A_slice into a (tm, R) f32 scratch."""
    k = pl.program_id(1)
    nk = pl.num_programs(1)

    @pl.when(k == 0)
    def _init():
        acc_ref[...] = jnp.zeros_like(acc_ref)

    x_blk = x_ref[...]
    if k_rem:   # static: K % tk != 0 -> zero the garbage tail of the last block
        col = jax.lax.broadcasted_iota(jnp.int32, x_blk.shape, 1)
        tail = jnp.logical_and(k == nk - 1, col >= k_rem)
        x_blk = jnp.where(tail, jnp.zeros((), x_blk.dtype), x_blk)

    # lora_A is fully VMEM-resident; slice the current K chunk in-kernel.
    a_blk = a_ref[pl.ds(pl.multiple_of(k * tk, tk), tk), :]
    acc_ref[...] += jnp.dot(x_blk, a_blk, preferred_element_type=jnp.float32)

    @pl.when(k == nk - 1)
    def _finalize():
        xa = acc_ref[...] * alpha_ref[0]
        y = jnp.dot(xa, b_ref[...].astype(jnp.float32),
                    preferred_element_type=jnp.float32)
        o_ref[...] = y.astype(o_ref.dtype)


# ------------------------------ tile selection ------------------------------

def _vmem_footprint(tm, tk, k_a, R, N, in_isz, out_isz, single_step):
    """Approximate VMEM bytes for the chosen tiling (incl. lane padding)."""
    r_lanes = _round_up(R, _LANE)
    n_lanes = _round_up(N, _LANE)
    x_b = 2 * tm * _round_up(tk, _LANE) * in_isz            # double-buffered x
    a_b = 2 * _round_up(k_a, _SUBLANE) * r_lanes * in_isz   # resident lora_A
    b_b = 2 * _round_up(R, _SUBLANE) * n_lanes * in_isz     # resident lora_B
    o_b = 2 * tm * n_lanes * out_isz                        # double-buffered out
    acc_b = 0 if single_step else tm * r_lanes * 4          # f32 accumulator
    return x_b + a_b + b_b + o_b + acc_b


def _select_tiles(M, K, R, N, in_isz, out_isz, budget, m_align, tile_m, tile_k):
    """Pick (tm, tk, k_rem); tk == K means a single fused reduction step."""
    m_full = _round_up(max(M, 1), m_align)
    tm_cap = max(m_align, min(_round_up(int(tile_m), m_align), m_full))

    # 1) Prefer collapsing K into a single step (no accumulator, no K grid).
    if tile_k is None or K <= int(tile_k):
        tm = tm_cap
        while True:
            if _vmem_footprint(tm, K, K, R, N, in_isz, out_isz, True) <= budget:
                return tm, K, 0
            if tm <= m_align:
                break
            tm = max(m_align, _round_up(tm // 2, m_align))

    # 2) K-tiled reduction: tk multiple of 128; shrink tk, then tm, until it fits.
    tk_cap = K if tile_k is None else max(int(tile_k), _LANE)
    tk = min(_round_up(tk_cap, _LANE), _round_up(K, _LANE))
    tm = tm_cap

    def fits(tm_, tk_):
        k_a = _round_up(K, tk_)
        return _vmem_footprint(tm_, tk_, k_a, R, N, in_isz, out_isz, False) <= budget

    while not fits(tm, tk):
        if tk > _LANE:
            tk = max(_LANE, _round_up(tk // 2, _LANE))
        elif tm > m_align:
            tm = max(m_align, _round_up(tm // 2, m_align))
        else:
            break   # smallest tiles; let the compiler try anyway
    if tk >= K:
        return tm, K, 0
    return tm, tk, K % tk


# --------------------------------- wrapper ----------------------------------

def lora_forward(x, lora_A, lora_B, alpha, *, tile_m=1024, tile_k=None,
                 vmem_fraction=0.72):
    """Computes (x @ lora_A @ lora_B) * alpha with a tiled Pallas TPU kernel.

    x: (..., K), lora_A: (K, R), lora_B: (R, N) -> (..., N) in x.dtype.
    Inputs are used in their stored dtype (pass bf16 arrays to halve HBM
    traffic); no wrapper-side casts or HBM pad copies of x are made.
    tile_k=None lets the kernel collapse the whole K reduction into a single
    step whenever it fits the generation-aware VMEM budget.
    """
    orig_shape = x.shape
    K = orig_shape[-1]
    Ka, R = lora_A.shape
    Rb, N = lora_B.shape
    if K != Ka or R != Rb:
        raise ValueError("shape mismatch between x, lora_A, lora_B")
    x2d = x.reshape(-1, K) if x.ndim != 2 else x
    M = x2d.shape[0]

    out_dtype = x.dtype
    in_isz = jnp.dtype(x.dtype).itemsize
    out_isz = jnp.dtype(out_dtype).itemsize
    m_align = 32 if in_isz == 1 else (16 if in_isz == 2 else 8)

    # Generation-aware VMEM budget (64 MiB on v7x, 128 MiB on v5e/v6e).
    try:
        cap = int(getattr(pltpu.get_tpu_info(), "vmem_capacity_bytes", 64 << 20))
    except Exception:   # no TPU info available -> conservative (v7x-safe)
        cap = 64 << 20
    budget = int(vmem_fraction * cap)

    tm, tk, k_rem = _select_tiles(M, K, R, N, in_isz, out_isz, budget,
                                  m_align, tile_m, tile_k)

    # Keep >= 2 M tiles when possible so both v7x TensorCores get work.
    if pl.cdiv(M, tm) == 1 and M > m_align:
        tm = max(m_align, _round_up((M + 1) // 2, m_align))
    nm = pl.cdiv(M, tm)

    single = (tk == K)
    if single:
        a_in = lora_A
        k_a = K
        grid = (nm,)
        x_spec = pl.BlockSpec((tm, K), lambda i, alpha_s: (i, 0))
        out_spec = pl.BlockSpec((tm, N), lambda i, alpha_s: (i, 0))
        scratch = []
        kernel = _lora_kernel_fused
        dims = ("parallel",)
    else:
        k_a = _round_up(K, tk)
        # Zero-pad only the tiny lora_A along K; x's K tail is masked in-kernel.
        a_in = lora_A if k_a == K else jnp.pad(lora_A, ((0, k_a - K), (0, 0)))
        grid = (nm, k_a // tk)
        x_spec = pl.BlockSpec((tm, tk), lambda i, k, alpha_s: (i, k))
        out_spec = pl.BlockSpec((tm, N), lambda i, k, alpha_s: (i, 0))
        scratch = [pltpu.VMEM((tm, R), jnp.float32)]
        kernel = functools.partial(_lora_kernel_ktiled, tk=tk, k_rem=k_rem)
        dims = ("parallel", "arbitrary")

    # lora_A / lora_B fully resident in VMEM (one HBM->VMEM copy for the whole call).
    a_spec = pl.BlockSpec(memory_space=pltpu.MemorySpace.VMEM)
    b_spec = pl.BlockSpec(memory_space=pltpu.MemorySpace.VMEM)

    alpha_arr = jnp.full((1,), alpha, dtype=jnp.float32)   # SMEM scalar

    footprint = _vmem_footprint(tm, tk, k_a, R, N, in_isz, out_isz, single)
    vmem_limit = int(min(max(budget, footprint + (2 << 20)), 100 * 1024 * 1024))

    cost = pl.CostEstimate(
        flops=2 * M * K * R + 2 * M * R * N,
        transcendentals=0,
        bytes_accessed=in_isz * (M * K + K * R + R * N) + out_isz * M * N,
    )

    # NOTE: for very large N with tiny M one could instead parallelize over N
    # tiles (x resident, B streamed); not needed for typical LoRA shapes.
    out2d = pl.pallas_call(
        kernel,
        out_shape=jax.ShapeDtypeStruct((M, N), out_dtype),
        grid_spec=pltpu.PrefetchScalarGridSpec(
            num_scalar_prefetch=1,                       # alpha -> SMEM
            grid=grid,
            in_specs=[x_spec, a_spec, b_spec],
            out_specs=out_spec,
            scratch_shapes=scratch,
        ),
        compiler_params=pltpu.CompilerParams(
            dimension_semantics=dims,
            vmem_limit_bytes=vmem_limit,
        ),
        cost_estimate=cost,
    )(alpha_arr, x2d, a_in, lora_B)

    if x.ndim != 2:
        return out2d.reshape(*orig_shape[:-1], N)
    return out2d


def init_lora_params(key, in_features, out_features, rank, dtype=jnp.float32):
    """Deterministic init matching the PyTorch module's __init__.

    lora_A is (in_features, rank); PyTorch's _calculate_fan_in_and_fan_out uses
    dim 1 for 2-D tensors, so fan_in=rank:
      gain = sqrt(2/(1+5)) = sqrt(1/3); bound = gain*sqrt(3/fan_in) = sqrt(1/rank)
    lora_B is zero-initialized.
    """
    bound = math.sqrt(1.0 / rank)
    lora_A = jax.random.uniform(
        key, (in_features, rank), dtype=dtype, minval=-bound, maxval=bound
    )
    lora_B = jnp.zeros((rank, out_features), dtype=dtype)
    return lora_A, lora_B


if __name__ == "__main__":
    key = jax.random.PRNGKey(0)
    k_x, k_a, k_b = jax.random.split(key, 3)

    # --- case 1: module-faithful init (lora_B zero), small f32 shapes ---------
    batch, in_features, out_features, rank, alpha = 8, 32, 32, 4, 2.0
    x = jax.random.normal(k_x, (batch, in_features), dtype=jnp.float32)
    lora_A, lora_B = init_lora_params(k_a, in_features, out_features, rank)
    y = jax.block_until_ready(lora_forward(x, lora_A, lora_B, alpha))
    y_ref = (x @ lora_A @ lora_B) * alpha
    assert y.shape == (batch, out_features)
    assert jnp.allclose(y, y_ref, atol=1e-5, rtol=1e-5)

    # --- case 2: forced K-grid (K tail mask), partial M tile, non-128 N -------
    M2, K2, N2, R2, alpha2 = 24, 200, 160, 8, 0.5
    x2 = jax.random.normal(k_x, (M2, K2), dtype=jnp.float32)
    A2 = jax.random.normal(k_a, (K2, R2), dtype=jnp.float32) * 0.1
    B2 = jax.random.normal(k_b, (R2, N2), dtype=jnp.float32) * 0.1
    y2 = jax.block_until_ready(
        lora_forward(x2, A2, B2, alpha2, tile_m=16, tile_k=128)
    )
    y2_ref = (x2 @ A2 @ B2) * alpha2
    assert y2.shape == (M2, N2)
    assert jnp.allclose(y2, y2_ref, atol=1e-3, rtol=1e-3)

    # --- case 3: bf16 inputs, fused single-K-step path (no wrapper casts) -----
    xb, Ab, Bb = (t.astype(jnp.bfloat16) for t in (x2, A2, B2))
    y3 = jax.block_until_ready(lora_forward(xb, Ab, Bb, alpha2))
    y3_ref = (xb.astype(jnp.float32) @ Ab.astype(jnp.float32)
              @ Bb.astype(jnp.float32)) * alpha2
    assert y3.shape == (M2, N2)
    assert jnp.allclose(y3.astype(jnp.float32), y3_ref, atol=5e-2, rtol=5e-2)

    # --- case 4: batched (3-D) x, like x of shape (B, S, K) through the module
    x4 = jax.random.normal(k_b, (2, 12, K2), dtype=jnp.float32)
    y4 = jax.block_until_ready(lora_forward(x4, A2, B2, alpha2))
    y4_ref = (x4 @ A2 @ B2) * alpha2
    assert y4.shape == (2, 12, N2)
    assert jnp.allclose(y4, y4_ref, atol=1e-3, rtol=1e-3)

    print("KERNEL_OK")
</pallas_src>

<mosaic_0001>
module attributes {stable_mosaic.version = 11 : i64} {
  func.func @_lora_kernel_fused(%arg0: i32, %arg1: memref<1xf32, #tpu.memory_space<smem>>, %arg2: memref<8x32xf32, #tpu.memory_space<vmem>>, %arg3: memref<32x4xf32, #tpu.memory_space<vmem>>, %arg4: memref<4x32xf32, #tpu.memory_space<vmem>>, %arg5: memref<8x32xf32, #tpu.memory_space<vmem>>) attributes {dimension_semantics = [#tpu.dimension_semantics<parallel>], iteration_bounds = array<i64: 1>, scalar_prefetch = 1 : i64, scratch_operands = 0 : i64, tpu.core_type = #tpu.core_type<tc>, window_params = [{transform_indices = @transform_0, window_bounds = array<i64: 8, 32>}, {pipeline_mode = #tpu.pipeline_mode<synchronous>, transform_indices = @transform_1, window_bounds = array<i64: 32, 4>}, {pipeline_mode = #tpu.pipeline_mode<synchronous>, transform_indices = @transform_2, window_bounds = array<i64: 4, 32>}, {transform_indices = @transform_3, window_bounds = array<i64: 8, 32>}]} {
    %c0 = arith.constant 0 : index
    %c0_0 = arith.constant 0 : index
    %0 = vector.load %arg2[%c0, %c0_0] : memref<8x32xf32, #tpu.memory_space<vmem>>, vector<8x32xf32>
    %c0_1 = arith.constant 0 : index
    %c0_2 = arith.constant 0 : index
    %1 = vector.load %arg3[%c0_1, %c0_2] : memref<32x4xf32, #tpu.memory_space<vmem>>, vector<32x4xf32>
    %cst = arith.constant dense<0.000000e+00> : vector<8x4xf32>
    %2 = tpu.matmul %0, %1, %cst {dimension_numbers = #tpu.dot_dimension_numbers<[1], [0], [0], [1], [0, 0, 1, 1], [], []>} : vector<8x32xf32>, vector<32x4xf32>, vector<8x4xf32> -> vector<8x4xf32>
    %c0_3 = arith.constant 0 : index
    %3 = memref.load %arg1[%c0_3] : memref<1xf32, #tpu.memory_space<smem>>
    %4 = vector.broadcast %3 : f32 to vector<8x4xf32>
    %5 = arith.mulf %2, %4 : vector<8x4xf32>
    %c0_4 = arith.constant 0 : index
    %c0_5 = arith.constant 0 : index
    %6 = vector.load %arg4[%c0_4, %c0_5] : memref<4x32xf32, #tpu.memory_space<vmem>>, vector<4x32xf32>
    %cst_6 = arith.constant dense<0.000000e+00> : vector<8x32xf32>
    %7 = tpu.matmul %5, %6, %cst_6 {dimension_numbers = #tpu.dot_dimension_numbers<[1], [0], [0], [1], [0, 0, 1, 1], [], []>} : vector<8x4xf32>, vector<4x32xf32>, vector<8x32xf32> -> vector<8x32xf32>
    %c0_7 = arith.constant 0 : index
    %c0_8 = arith.constant 0 : index
    %8 = vector.load %arg5[%c0_7, %c0_8] : memref<8x32xf32, #tpu.memory_space<vmem>>, vector<8x32xf32>
    tpu.vector_store %arg5[%c0_7, %c0_8], %7 {strides = array<i32>} : memref<8x32xf32, #tpu.memory_space<vmem>>, vector<8x32xf32>,
    return
  }
  func.func @transform_0(%arg0: i32, %arg1: memref<1xf32, #tpu.memory_space<smem>>) -> (i32, i32) {
    %c0_i32 = arith.constant 0 : i32
    %c0_i32_0 = arith.constant 0 : i32
    return %arg0, %c0_i32 : i32, i32
  }
  func.func @transform_1(%arg0: i32, %arg1: memref<1xf32, #tpu.memory_space<smem>>) -> (i32, i32) {
    %c0_i32 = arith.constant 0 : i32
    %c0_i32_0 = arith.constant 0 : i32
    %c0_i32_1 = arith.constant 0 : i32
    return %c0_i32, %c0_i32_0 : i32, i32
  }
  func.func @transform_2(%arg0: i32, %arg1: memref<1xf32, #tpu.memory_space<smem>>) -> (i32, i32) {
    %c0_i32 = arith.constant 0 : i32
    %c0_i32_0 = arith.constant 0 : i32
    %c0_i32_1 = arith.constant 0 : i32
    return %c0_i32, %c0_i32_0 : i32, i32
  }
  func.func @transform_3(%arg0: i32, %arg1: memref<1xf32, #tpu.memory_space<smem>>) -> (i32, i32) {
    %c0_i32 = arith.constant 0 : i32
    %c0_i32_0 = arith.constant 0 : i32
    return %arg0, %c0_i32 : i32, i32
  }
}

</mosaic_0001>

<llo_original>
// kernel: tpu_custom_call.1
$region0: #{tpu_custom_call.1}
  #allocation0 [shape = 'u32[]', space=smem, size = 0x4, offset = 0x4, fixed_abs, tag = 'smem constant byte address 0x4 - core index']
  #allocation1 [shape = 'u32[144,128]{1,0:T(1,128)}', space=vmem, size = 0x12000, scoped, tag = 'internal scratch']
  #allocation2 [shape = 's32[1]{0}', space=sflag, size = 0x4, scoped, tag = 'scoped memory for tpu_custom_call.1']
  #allocation3 [shape = 'f32[1]{0:T(128)S(6)}', space=smem, size = 0x200, scoped, tag = 'prefetched SMEM operand 0']
  %s0 = inlined_call_operand.<no memory space> [shape: f32[1], index: 0, kind: input, shape index: {}]
  %s1 = inlined_call_operand.vmem [shape: f32[8,32], index: 1, kind: input, shape index: {}]
  %s2 = inlined_call_operand.vmem [shape: f32[32,4], index: 2, kind: input, shape index: {}]
  %s3 = inlined_call_operand.vmem [shape: f32[4,32], index: 3, kind: input, shape index: {}]
  %s4 = inlined_call_operand.hbm [shape: f32[8,32], index: 4, kind: output, shape index: {}]
  %s5 = sld [smem:[#allocation0]]
  $region22: #{tpu_custom_call.1} parent=0
    _
  %s7 = ssub.s32 1, %s5
  %s8 = scalar_select 0, %s7, %s5
  %9 = sst [smem:[#allocation3]] %s0
  $region1: #{tpu_custom_call.1} parent=0
    #allocation4 [shape = 'u8[4096]{0}', space=vmem, size = 0x1000, scoped, tag = 'output window, operand 0, single buffered']
    #allocation5 [shape = 's32[1]{0}', space=sflag, size = 0x4, scoped, tag = 'scoped memory for tpu_custom_call.1']
    %10 = vsyncpa [#allocation5], 0
    // Predicated region
    $region2: #{tpu_custom_call.1} parent=1 // pred_check
      _
    $region3: #{tpu_custom_call.1} parent=1 // pred_check_branch
      %12 = sbr.rel (0) target = $region5
    $region4: #{tpu_custom_call.1} parent=1 // pred_region
      _
    $region5: #{tpu_custom_call.1} parent=1 // pred_fallthru
      _
    // Predicated region
    $region6: #{tpu_custom_call.1} parent=1 // pred_check
      _
    $region7: #{tpu_custom_call.1} parent=1 // pred_check_branch
      %14 = sbr.rel (0) target = $region9
    $region8: #{tpu_custom_call.1} parent=1 // pred_region
      _
    $region9: #{tpu_custom_call.1} parent=1 // pred_fallthru
      _
    // Predicated region
    $region10: #{tpu_custom_call.1} parent=1 // pred_check
      _
    $region11: #{tpu_custom_call.1} parent=1 // pred_check_branch
      %16 = sbr.rel (0) target = $region13
    $region12: #{tpu_custom_call.1} parent=1 // pred_region
      _
    $region13: #{tpu_custom_call.1} parent=1 // pred_fallthru
      _
    %v17 = vld [vmem:[%s1] sm:$0xff]
    %v18 = vld [vmem:[%s2] sm:$0xff]
    %v19 = vld [vmem:[%s2 + $0x8] sm:$0xff]
    %v20 = vld [vmem:[%s2 + $0x10] sm:$0xff]
    %v21 = vld [vmem:[%s2 + $0x18] sm:$0xff]
    %vm22 = vcmask 261120
    %v24 = vsel %vm22, %v17, 0
    %26 = vmatprep.subr.mxu0 0.0
    %27 = vmatpush1.msra.mxu0 0.0
    %28 = vmatprep.subr.mxu0 0.0
    %29 = vmatpush1.msra.mxu0 0.0
    %30 = vmatprep.subr.mxu0 0.0
    %31 = vmatpush1.msra.mxu0 0.0
    %32 = vmatprep.subr.mxu0 0.0
    %33 = vmatpush1.msra.mxu0 0.0
    %34 = vmatprep.subr.mxu0 0.0
    %35 = vmatpush1.msra.mxu0 0.0
    %36 = vmatprep.subr.mxu0 0.0
    %37 = vmatpush1.msra.mxu0 0.0
    %38 = vmatprep.subr.mxu0 0.0
    %39 = vmatpush1.msra.mxu0 0.0
    %40 = vmatprep.subr.mxu0 0.0
    %41 = vmatpush1.msra.mxu0 0.0
    %42 = vmatprep.subr.mxu0 0.0
    %43 = vmatpush1.msra.mxu0 0.0
    %44 = vmatprep.subr.mxu0 0.0
    %45 = vmatpush1.msra.mxu0 0.0
    %46 = vmatprep.subr.mxu0 0.0
    %47 = vmatpush1.msra.mxu0 0.0
    %48 = vmatprep.subr.mxu0 0.0
    %49 = vmatpush1.msra.mxu0 0.0
    %50 = vmatprep.subr.mxu0 0.0
    %51 = vmatpush1.msra.mxu0 %v21
    %52 = vmatprep.subr.mxu0 0.0
    %53 = vmatpush1.msra.mxu0 %v20
    %54 = vmatprep.subr.mxu0 0.0
    %55 = vmatpush1.msra.mxu0 %v19
    %56 = vmatprep.subr.mxu0 0.0
    %57 = vmatpush1.msra.mxu0 %v18
    %58 = vmatprep.subr.mxu0 0.0
    %59 = vmatpush2.msra.mxu0 0.0
    %60 = vmatprep.subr.mxu0 0.0
    %61 = vmatpush2.msra.mxu0 0.0
    %62 = vmatprep.subr.mxu0 0.0
    %63 = vmatpush2.msra.mxu0 0.0
    %64 = vmatprep.subr.mxu0 0.0
    %65 = vmatpush2.msra.mxu0 0.0
    %66 = vmatprep.subr.mxu0 0.0
    %67 = vmatpush2.msra.mxu0 0.0
    %68 = vmatprep.subr.mxu0 0.0
    %69 = vmatpush2.msra.mxu0 0.0
    %70 = vmatprep.subr.mxu0 0.0
    %71 = vmatpush2.msra.mxu0 0.0
    %72 = vmatprep.subr.mxu0 0.0
    %73 = vmatpush2.msra.mxu0 0.0
    %74 = vmatprep.subr.mxu0 0.0
    %75 = vmatpush2.msra.mxu0 0.0
    %76 = vmatprep.subr.mxu0 0.0
    %77 = vmatpush2.msra.mxu0 0.0
    %78 = vmatprep.subr.mxu0 0.0
    %79 = vmatpush2.msra.mxu0 0.0
    %80 = vmatprep.subr.mxu0 0.0
    %81 = vmatpush2.msra.mxu0 0.0
    %82 = vmatprep.subr.mxu0 0.0
    %83 = vmatpush2.msra.mxu0 0.0
    %84 = vmatprep.subr.mxu0 0.0
    %85 = vmatpush2.msra.mxu0 0.0
    %86 = vmatprep.subr.mxu0 0.0
    %87 = vmatpush2.msra.mxu0 0.0
    %88 = vmatprep.subr.mxu0 0.0
    %89 = vmatpush2.msra.mxu0 0.0
    %90 = vmatprep.mubr.f32.mxu0 0.0
    %91 = vmatmul.mubr.f32.gmra.mxu0 %v24
    %v92 = vpop.f32.mrf.mxu0
    %v93 = vadd.f32 0.0, %v92
    %v94 = vpop.f32.mrf.mxu0
    %95 = vdwg.mxu0
    %s96 = sld [smem:[#allocation3]]
    %v97 = vstv %s96
    %v98 = vmul.f32 %v93, %v97
    %v99 = vld [vmem:[%s3] sm:$0xf]
    %vm100 = vcmask 31744
    %v102 = vsel %vm100, %v98, 0
    %vm104 = vcmask 1043456
    %v106 = vsel %vm104, %v99, 0
    %108 = vmatprep.subr.mxu0 0.0
    %109 = vmatpush1.msra.mxu0 0.0
    %110 = vmatprep.subr.mxu0 0.0
    %111 = vmatpush1.msra.mxu0 0.0
    %112 = vmatprep.subr.mxu0 0.0
    %113 = vmatpush1.msra.mxu0 0.0
    %114 = vmatprep.subr.mxu0 0.0
    %115 = vmatpush1.msra.mxu0 0.0
    %116 = vmatprep.subr.mxu0 0.0
    %117 = vmatpush1.msra.mxu0 0.0
    %118 = vmatprep.subr.mxu0 0.0
    %119 = vmatpush1.msra.mxu0 0.0
    %120 = vmatprep.subr.mxu0 0.0
    %121 = vmatpush1.msra.mxu0 0.0
    %122 = vmatprep.subr.mxu0 0.0
    %123 = vmatpush1.msra.mxu0 0.0
    %124 = vmatprep.subr.mxu0 0.0
    %125 = vmatpush1.msra.mxu0 0.0
    %126 = vmatprep.subr.mxu0 0.0
    %127 = vmatpush1.msra.mxu0 0.0
    %128 = vmatprep.subr.mxu0 0.0
    %129 = vmatpush1.msra.mxu0 0.0
    %130 = vmatprep.subr.mxu0 0.0
    %131 = vmatpush1.msra.mxu0 0.0
    %132 = vmatprep.subr.mxu0 0.0
    %133 = vmatpush1.msra.mxu0 0.0
    %134 = vmatprep.subr.mxu0 0.0
    %135 = vmatpush1.msra.mxu0 0.0
    %136 = vmatprep.subr.mxu0 0.0
    %137 = vmatpush1.msra.mxu0 0.0
    %138 = vmatprep.subr.mxu0 0.0
    %139 = vmatpush1.msra.mxu0 %v106
    %140 = vmatprep.subr.mxu0 0.0
    %141 = vmatpush2.msra.mxu0 0.0
    %142 = vmatprep.subr.mxu0 0.0
    %143 = vmatpush2.msra.mxu0 0.0
    %144 = vmatprep.subr.mxu0 0.0
    %145 = vmatpush2.msra.mxu0 0.0
    %146 = vmatprep.subr.mxu0 0.0
    %147 = vmatpush2.msra.mxu0 0.0
    %148 = vmatprep.subr.mxu0 0.0
    %149 = vmatpush2.msra.mxu0 0.0
    %150 = vmatprep.subr.mxu0 0.0
    %151 = vmatpush2.msra.mxu0 0.0
    %152 = vmatprep.subr.mxu0 0.0
    %153 = vmatpush2.msra.mxu0 0.0
    %154 = vmatprep.subr.mxu0 0.0
    %155 = vmatpush2.msra.mxu0 0.0
    %156 = vmatprep.subr.mxu0 0.0
    %157 = vmatpush2.msra.mxu0 0.0
    %158 = vmatprep.subr.mxu0 0.0
    %159 = vmatpush2.msra.mxu0 0.0
    %160 = vmatprep.subr.mxu0 0.0
    %161 = vmatpush2.msra.mxu0 0.0
    %162 = vmatprep.subr.mxu0 0.0
    %163 = vmatpush2.msra.mxu0 0.0
    %164 = vmatprep.subr.mxu0 0.0
    %165 = vmatpush2.msra.mxu0 0.0
    %166 = vmatprep.subr.mxu0 0.0
    %167 = vmatpush2.msra.mxu0 0.0
    %168 = vmatprep.subr.mxu0 0.0
    %169 = vmatpush2.msra.mxu0 0.0
    %170 = vmatprep.subr.mxu0 0.0
    %171 = vmatpush2.msra.mxu0 0.0
    %172 = vmatprep.mubr.f32.mxu0 0.0
    %173 = vmatmul.mubr.f32.gmra.mxu0 %v102
    %v174 = vpop.f32.mrf.mxu0
    %v175 = vadd.f32 0.0, %v174
    %v176 = vpop.f32.mrf.mxu0
    %177 = vdwg.mxu0
    %178 = vst.msk [vmem:[#allocation4] sm:$0xff] %vm22, %v175
    // Predicated region
    $region14: #{tpu_custom_call.1} parent=1 // pred_check
      _
    $region15: #{tpu_custom_call.1} parent=1 // pred_check_branch
      %180 = sbr.rel (0) target = $region17
    $region16: #{tpu_custom_call.1} parent=1 // pred_region
      %s182 = ssub.s32 128, 128
      %183 = vsyncadd [#allocation5], %s182
      %s185 = sshll.u32 [#allocation4], 4
      %s186 = int_to_ptr.vmem [resolvable:$true] %s185
      %188 = dma.vmem_to_hbm [thread:$0]  %s186, 128, %s4, [#allocation5]
    $region17: #{tpu_custom_call.1} parent=1 // pred_fallthru
      _
    // Predicated region
    $region18: #{tpu_custom_call.1} parent=1 // pred_check
      _
    $region19: #{tpu_custom_call.1} parent=1 // pred_check_branch
      %190 = sbr.rel (0) target = $region21
    $region20: #{tpu_custom_call.1} parent=1 // pred_region
      %191 = dma.done [#allocation5], 128
    $region21: #{tpu_custom_call.1} parent=1 // pred_fallthru
      _
    %192 = vsyncpa [#allocation5], 1

</llo_original>
